<compile_context>
chip_gen: v5e
topology: v5e:2x2
jax: 0.10.0
libtpu: 0.0.40
codegen_flags: <defaults>
</compile_context>

<pallas_src>
import functools

import jax
import jax.numpy as jnp
from jax.experimental import pallas as pl
from jax.experimental.pallas import tpu as pltpu

_LANE = 128
_SUBLANE = 8
_T_CAP = 65536  # max pixel lanes per grid step; double-buffered in+out <= ~12 MiB


def _round_up(x, m):
    return ((x + m - 1) // m) * m


def _osa_kernel(x_ref, w_ref, b_ref, o_ref, *, gc, gcd, r1, r2):
    """One grid step.

    x_ref: (1, gc, T)   channels (x packed batch group) on sublanes, pixels on lanes
    w_ref: (2*r1+3*r2, gc)  packed [w1; w2; wc_x; wc_t1; wc_t2] (8-row-aligned segments)
    b_ref: (2*r1+r2, 1)     packed [b1; b2; bc]
    o_ref: (1, gcd, T)
    """
    x = x_ref[0]                                    # (gc, T)
    w = w_ref[...]
    b = b_ref[...]

    # Static, sublane-aligned slices of the packed constant slabs.
    w1 = w[0:gc]
    w2 = w[r1:r1 + gc]
    wcx = w[2 * r1:2 * r1 + gcd]
    wct1 = w[2 * r1 + r2:2 * r1 + r2 + gcd]
    wct2 = w[2 * r1 + 2 * r2:2 * r1 + 2 * r2 + gcd]
    b1 = b[0:gc]
    b2 = b[r1:r1 + gc]
    bc = b[2 * r1:2 * r1 + gcd]

    # component 1: conv1x1 + ReLU
    t1 = jnp.dot(w1, x, preferred_element_type=jnp.float32) + b1
    t1 = jnp.maximum(t1, 0.0)                       # (gc, T)

    # component 2: conv1x1 + ReLU
    t2 = jnp.dot(w2, t1, preferred_element_type=jnp.float32) + b2
    t2 = jnp.maximum(t2, 0.0)                       # (gc, T)

    # combiner conv1x1 over concat([x, t1, t2], channel) == split matmul
    out = (jnp.dot(wcx, x, preferred_element_type=jnp.float32)
           + jnp.dot(wct1, t1, preferred_element_type=jnp.float32)
           + jnp.dot(wct2, t2, preferred_element_type=jnp.float32)
           + bc)                                    # (gcd, T)
    o_ref[0] = out.astype(o_ref.dtype)


def one_shot_aggregation_res_through(m_nchw, params):
    """m_nchw: (N, C, H, W) float32. Returns (N, CD, H, W)."""
    w1, b1, w2, b2, wc, bc = params          # PyTorch conv layout: w (out,in), b (out,)
    N, C, H, W = m_nchw.shape
    CD = wc.shape[0]
    HW = H * W

    # ---- sublane packing: fold G images into the 8 sublanes when C is small ----
    G = 1
    if C < _SUBLANE and _SUBLANE % C == 0 and N % (_SUBLANE // C) == 0:
        G = _SUBLANE // C
    GC, GCD = G * C, G * CD
    NB = N // G

    eye_g = jnp.eye(G, dtype=jnp.float32)
    w1g = jnp.kron(eye_g, w1)                        # (GC, GC) block-diagonal
    w2g = jnp.kron(eye_g, w2)
    wcxg = jnp.kron(eye_g, wc[:, 0:C])               # (GCD, GC)
    wct1g = jnp.kron(eye_g, wc[:, C:2 * C])
    wct2g = jnp.kron(eye_g, wc[:, 2 * C:3 * C])
    b1g = jnp.tile(b1, G).reshape(GC, 1)
    b2g = jnp.tile(b2, G).reshape(GC, 1)
    bcg = jnp.tile(bc, G).reshape(GCD, 1)

    # ---- pack all constants into two slabs (row segments 8-aligned) ----
    r1 = _round_up(GC, _SUBLANE)
    r2 = _round_up(GCD, _SUBLANE)

    def pad_rows(a, rows):
        return jnp.pad(a, ((0, rows - a.shape[0]), (0, 0)))

    w_all = jnp.concatenate(
        [pad_rows(w1g, r1), pad_rows(w2g, r1),
         pad_rows(wcxg, r2), pad_rows(wct1g, r2), pad_rows(wct2g, r2)], axis=0)
    b_all = jnp.concatenate(
        [pad_rows(b1g, r1), pad_rows(b2g, r1), pad_rows(bcg, r2)], axis=0)

    # NCHW flattened over spatial (and batch-group folded into sublanes) is a
    # pure metadata reshape: channels on sublanes, pixels on lanes, no HBM copy.
    x = m_nchw.reshape(NB, GC, HW)

    # ---- pixel tile: as large as VMEM allows, lane-aligned, no wrapper padding ----
    n_tiles = pl.cdiv(HW, _T_CAP)
    if NB * n_tiles < 2 and HW > _LANE:
        n_tiles = 2                      # give v7x's two TensorCores >=2 parallel units
    if n_tiles == 1:
        T = HW                           # single full-extent block (always legal)
    else:
        T = _round_up(pl.cdiv(HW, n_tiles), _LANE)
        n_tiles = pl.cdiv(HW, T)         # last block may be ragged; Pallas masks it

    const = lambda n, j: (0, 0)
    kernel = functools.partial(_osa_kernel, gc=GC, gcd=GCD, r1=r1, r2=r2)

    out = pl.pallas_call(
        kernel,
        out_shape=jax.ShapeDtypeStruct((NB, GCD, HW), jnp.float32),
        grid_spec=pltpu.PrefetchScalarGridSpec(
            num_scalar_prefetch=0,
            grid=(NB, n_tiles),
            in_specs=[
                pl.BlockSpec((1, GC, T), lambda n, j: (n, 0, j)),   # x tile
                pl.BlockSpec(w_all.shape, const),                    # packed weights
                pl.BlockSpec(b_all.shape, const),                    # packed biases
            ],
            out_specs=pl.BlockSpec((1, GCD, T), lambda n, j: (n, 0, j)),
        ),
        compiler_params=pltpu.CompilerParams(
            dimension_semantics=("parallel", "parallel"),
            vmem_limit_bytes=32 * 1024 * 1024,
        ),
    )(x, w_all, b_all)

    # (NB, G*CD, HW) -> (N, CD, H, W): pure metadata reshape (no extra HBM pass).
    return out.reshape(N, CD, H, W)


def _reference(m_nchw, params):
    """Pure-JAX reference matching the PyTorch forward exactly."""
    w1, b1, w2, b2, wc, bc = params
    N, C, H, W = m_nchw.shape
    CD = wc.shape[0]
    x = jnp.transpose(m_nchw, (0, 2, 3, 1)).reshape(-1, C)
    t1 = jnp.maximum(x @ w1.T + b1, 0.0)
    t2 = jnp.maximum(t1 @ w2.T + b2, 0.0)
    cat = jnp.concatenate([x, t1, t2], axis=-1)
    o = cat @ wc.T + bc
    return jnp.transpose(o.reshape(N, H, W, CD), (0, 3, 1, 2))


def make_params(key, C, CD):
    """Deterministic init; shapes follow PyTorch Conv2d (out_ch, in_ch) convention."""
    ks = jax.random.split(key, 6)
    s1 = 1.0 / jnp.sqrt(C)
    sc = 1.0 / jnp.sqrt(3 * C)
    w1 = jax.random.uniform(ks[0], (C, C), jnp.float32, -s1, s1)
    b1 = jax.random.uniform(ks[1], (C,), jnp.float32, -s1, s1)
    w2 = jax.random.uniform(ks[2], (C, C), jnp.float32, -s1, s1)
    b2 = jax.random.uniform(ks[3], (C,), jnp.float32, -s1, s1)
    wc = jax.random.uniform(ks[4], (CD, 3 * C), jnp.float32, -sc, sc)
    bc = jax.random.uniform(ks[5], (CD,), jnp.float32, -sc, sc)
    return (w1, b1, w2, b2, wc, bc)


if __name__ == "__main__":
    key = jax.random.PRNGKey(0)
    kx, kp = jax.random.split(key)

    N, C, H, W = 2, 4, 16, 16
    CD = 8  # chanDest; chanTotal = 3 * C = 12

    m = jax.random.normal(kx, (N, C, H, W), jnp.float32)
    params = make_params(kp, C, CD)

    out = jax.block_until_ready(one_shot_aggregation_res_through(m, params))
    ref = jax.block_until_ready(_reference(m, params))

    assert out.shape == (N, CD, H, W)
    assert jnp.allclose(out, ref, rtol=1e-5, atol=1e-5)

    print("KERNEL_OK")
</pallas_src>

<mosaic_0001>
module attributes {stable_mosaic.version = 11 : i64} {
  func.func @_osa_kernel(%arg0: i32, %arg1: i32, %arg2: memref<1x8x128xf32, #tpu.memory_space<vmem>>, %arg3: memref<64x8xf32, #tpu.memory_space<vmem>>, %arg4: memref<32x1xf32, #tpu.memory_space<vmem>>, %arg5: memref<1x16x128xf32, #tpu.memory_space<vmem>>) attributes {dimension_semantics = [#tpu.dimension_semantics<parallel>, #tpu.dimension_semantics<parallel>], iteration_bounds = array<i64: 1, 2>, scalar_prefetch = 0 : i64, scratch_operands = 0 : i64, tpu.core_type = #tpu.core_type<tc>, window_params = [{transform_indices = @transform_0, window_bounds = array<i64: 1, 8, 128>}, {pipeline_mode = #tpu.pipeline_mode<synchronous>, transform_indices = @transform_1, window_bounds = array<i64: 64, 8>}, {pipeline_mode = #tpu.pipeline_mode<synchronous>, transform_indices = @transform_2, window_bounds = array<i64: 32, 1>}, {transform_indices = @transform_3, window_bounds = array<i64: 1, 16, 128>}]} {
    %c0 = arith.constant 0 : index
    %c0_0 = arith.constant 0 : index
    %c0_1 = arith.constant 0 : index
    %0 = vector.load %arg2[%c0, %c0_0, %c0_1] : memref<1x8x128xf32, #tpu.memory_space<vmem>>, vector<1x8x128xf32>
    %1 = vector.shape_cast %0 : vector<1x8x128xf32> to vector<8x128xf32>
    %c0_2 = arith.constant 0 : index
    %c0_3 = arith.constant 0 : index
    %2 = vector.load %arg3[%c0_2, %c0_3] : memref<64x8xf32, #tpu.memory_space<vmem>>, vector<64x8xf32>
    %c0_4 = arith.constant 0 : index
    %c0_5 = arith.constant 0 : index
    %3 = vector.load %arg4[%c0_4, %c0_5] : memref<32x1xf32, #tpu.memory_space<vmem>>, vector<32x1xf32>
    %4 = vector.extract_strided_slice %2 {offsets = [0, 0], sizes = [8, 8], strides = [1, 1]} : vector<64x8xf32> to vector<8x8xf32>
    %5 = vector.extract_strided_slice %2 {offsets = [8, 0], sizes = [8, 8], strides = [1, 1]} : vector<64x8xf32> to vector<8x8xf32>
    %6 = vector.extract_strided_slice %2 {offsets = [16, 0], sizes = [16, 8], strides = [1, 1]} : vector<64x8xf32> to vector<16x8xf32>
    %7 = vector.extract_strided_slice %2 {offsets = [32, 0], sizes = [16, 8], strides = [1, 1]} : vector<64x8xf32> to vector<16x8xf32>
    %8 = vector.extract_strided_slice %2 {offsets = [48, 0], sizes = [16, 8], strides = [1, 1]} : vector<64x8xf32> to vector<16x8xf32>
    %9 = vector.extract_strided_slice %3 {offsets = [0, 0], sizes = [8, 1], strides = [1, 1]} : vector<32x1xf32> to vector<8x1xf32>
    %10 = vector.extract_strided_slice %3 {offsets = [8, 0], sizes = [8, 1], strides = [1, 1]} : vector<32x1xf32> to vector<8x1xf32>
    %11 = vector.extract_strided_slice %3 {offsets = [16, 0], sizes = [16, 1], strides = [1, 1]} : vector<32x1xf32> to vector<16x1xf32>
    %cst = arith.constant dense<0.000000e+00> : vector<8x128xf32>
    %12 = tpu.matmul %4, %1, %cst {dimension_numbers = #tpu.dot_dimension_numbers<[1], [0], [0], [1], [0, 0, 1, 1], [], []>} : vector<8x8xf32>, vector<8x128xf32>, vector<8x128xf32> -> vector<8x128xf32>
    %13 = vector.broadcast %9 : vector<8x1xf32> to vector<8x128xf32>
    %14 = arith.addf %12, %13 : vector<8x128xf32>
    %cst_6 = arith.constant 0.000000e+00 : f32
    %15 = vector.broadcast %cst_6 : f32 to vector<8x128xf32>
    %16 = arith.maximumf %14, %15 : vector<8x128xf32>
    %cst_7 = arith.constant dense<0.000000e+00> : vector<8x128xf32>
    %17 = tpu.matmul %5, %16, %cst_7 {dimension_numbers = #tpu.dot_dimension_numbers<[1], [0], [0], [1], [0, 0, 1, 1], [], []>} : vector<8x8xf32>, vector<8x128xf32>, vector<8x128xf32> -> vector<8x128xf32>
    %18 = vector.broadcast %10 : vector<8x1xf32> to vector<8x128xf32>
    %19 = arith.addf %17, %18 : vector<8x128xf32>
    %cst_8 = arith.constant 0.000000e+00 : f32
    %20 = vector.broadcast %cst_8 : f32 to vector<8x128xf32>
    %21 = arith.maximumf %19, %20 : vector<8x128xf32>
    %cst_9 = arith.constant dense<0.000000e+00> : vector<16x128xf32>
    %22 = tpu.matmul %6, %1, %cst_9 {dimension_numbers = #tpu.dot_dimension_numbers<[1], [0], [0], [1], [0, 0, 1, 1], [], []>} : vector<16x8xf32>, vector<8x128xf32>, vector<16x128xf32> -> vector<16x128xf32>
    %cst_10 = arith.constant dense<0.000000e+00> : vector<16x128xf32>
    %23 = tpu.matmul %7, %16, %cst_10 {dimension_numbers = #tpu.dot_dimension_numbers<[1], [0], [0], [1], [0, 0, 1, 1], [], []>} : vector<16x8xf32>, vector<8x128xf32>, vector<16x128xf32> -> vector<16x128xf32>
    %24 = arith.addf %22, %23 : vector<16x128xf32>
    %cst_11 = arith.constant dense<0.000000e+00> : vector<16x128xf32>
    %25 = tpu.matmul %8, %21, %cst_11 {dimension_numbers = #tpu.dot_dimension_numbers<[1], [0], [0], [1], [0, 0, 1, 1], [], []>} : vector<16x8xf32>, vector<8x128xf32>, vector<16x128xf32> -> vector<16x128xf32>
    %26 = arith.addf %24, %25 : vector<16x128xf32>
    %27 = vector.broadcast %11 : vector<16x1xf32> to vector<16x128xf32>
    %28 = arith.addf %26, %27 : vector<16x128xf32>
    %c0_12 = arith.constant 0 : index
    %c0_13 = arith.constant 0 : index
    %c0_14 = arith.constant 0 : index
    %29 = vector.load %arg5[%c0_12, %c0_13, %c0_14] : memref<1x16x128xf32, #tpu.memory_space<vmem>>, vector<1x16x128xf32>
    %30 = vector.shape_cast %29 : vector<1x16x128xf32> to vector<16x128xf32>
    %31 = vector.shape_cast %28 : vector<16x128xf32> to vector<1x16x128xf32>
    tpu.vector_store %arg5[%c0_12, %c0_13, %c0_14], %31 {strides = array<i32>} : memref<1x16x128xf32, #tpu.memory_space<vmem>>, vector<1x16x128xf32>,
    return
  }
  func.func @transform_0(%arg0: i32, %arg1: i32) -> (i32, i32, i32) {
    %c0_i32 = arith.constant 0 : i32
    %c0_i32_0 = arith.constant 0 : i32
    return %arg0, %c0_i32, %arg1 : i32, i32, i32
  }
  func.func @transform_1(%arg0: i32, %arg1: i32) -> (i32, i32) {
    %c0_i32 = arith.constant 0 : i32
    %c0_i32_0 = arith.constant 0 : i32
    %c0_i32_1 = arith.constant 0 : i32
    return %c0_i32, %c0_i32_0 : i32, i32
  }
  func.func @transform_2(%arg0: i32, %arg1: i32) -> (i32, i32) {
    %c0_i32 = arith.constant 0 : i32
    %c0_i32_0 = arith.constant 0 : i32
    %c0_i32_1 = arith.constant 0 : i32
    return %c0_i32, %c0_i32_0 : i32, i32
  }
  func.func @transform_3(%arg0: i32, %arg1: i32) -> (i32, i32, i32) {
    %c0_i32 = arith.constant 0 : i32
    %c0_i32_0 = arith.constant 0 : i32
    return %arg0, %c0_i32, %arg1 : i32, i32, i32
  }
}

</mosaic_0001>

<llo_original>
// kernel: tpu_custom_call.1
$region0: #{tpu_custom_call.1}
  #allocation0 [shape = 'u32[]', space=smem, size = 0x4, offset = 0x4, fixed_abs, tag = 'smem constant byte address 0x4 - core index']
  #allocation1 [shape = 'u32[72,128]{1,0:T(1,128)}', space=vmem, size = 0x9000, scoped, tag = 'internal scratch']
  %s0 = inlined_call_operand.vmem [shape: f32[1,8,256], index: 0, kind: input, shape index: {}]
  %s1 = inlined_call_operand.vmem [shape: f32[64,8], index: 1, kind: input, shape index: {}]
  %s2 = inlined_call_operand.vmem [shape: f32[32,1], index: 2, kind: input, shape index: {}]
  %s3 = inlined_call_operand.hbm [shape: f32[1,16,256], index: 3, kind: output, shape index: {}]
  %s4 = sld [smem:[#allocation0]]
  $region45: #{tpu_custom_call.1} parent=0
    _
  %s6 = ssub.s32 1, %s4
  %s7 = scalar_select 0, %s6, %s4
  $region1: #{tpu_custom_call.1} parent=0
    #allocation2 [shape = 'u8[16384]{0}', space=vmem, size = 0x4000, scoped, tag = 'output window, operand 0']
    #allocation3 [shape = 's32[2]{0}', space=sflag, size = 0x8, scoped, tag = 'scoped memory for tpu_custom_call.1']
    %8 = vsyncpa [#allocation3], 0
    %s9 = scalar_lea.sflag [#allocation3], 1
    %10 = vsyncpa %s9, 0
    loop: start=0, step=1, limit=4
    $region2: #{tpu_custom_call.1} parent=1 // loop_pre_header
      _
    $region3: #{tpu_custom_call.1} parent=1 // loop_header
      %s12 = sphi 0, %s16
      %p13 = scmp.ge.s32.totalorder %s12, 4
      %s19 = sphi 0, %s31
      %s20 = sphi 0, %s27
      %s21 = sphi 0, %s19
      %s22 = sphi 0, %s20
      %s23 = sphi 0, %s21
      %s24 = sphi 0, %s22
      %s36 = sphi 0, %s38
      %s39 = sphi 0, %s36
      %s40 = sphi 0, %s39
      %s56 = sphi 0, %s40
      %s60 = sphi 0, %s60
      %s62 = sphi 0, %s60
      %s63 = sphi 0, %s62
      %s77 = sphi 0, %s63
      %s81 = sphi 0, %s81
      %s83 = sphi 0, %s81
      %s84 = sphi 0, %s83
      %s98 = sphi 0, %s84
      %s106 = sphi 0, %s108
      %s109 = sphi 0, %s106
      %s110 = sphi 0, %s109
      %s126 = sphi 0, %s110
    $region4: #{tpu_custom_call.1} parent=1 // loop_header_branch
      %15 = sbr.rel (%p13) target = $region8
    $region5: #{tpu_custom_call.1} parent=1 // loop_body
      %s17 = ssub.s32 %s12, 1
      %s18 = ssub.s32 %s12, 2
      %s25 = sadd.s32 1, %s20
      %p26 = scmp.ge.s32.totalorder %s25, 2
      %s27 = scalar_select %p26, 0, %s25
      %s28 = sadd.s32 1, %s19
      %s29 = scalar_select %p26, %s28, %s19
      %p30 = scmp.ge.s32.totalorder %s29, 1
      %s31 = scalar_select %p30, 0, %s29
      %s32 = ssub.s32 %s19, %s31
      %s33 = ssub.s32 %s20, %s27
      %s34 = sor.u32 %s32, %s33
      %p35 = scmp.eq.s32.totalorder %s34, 0
      %s37 = sadd.s32 %s36, 1
      %s38 = scalar_select %p35, %s36, %s37
      %p41 = pneg %p35
      %p42 = scmp.eq.s32.totalorder %s12, 1
      %p43 = por %p41, %p42
      %p44 = scmp.ne.s32.totalorder %s36, %s39
      %p45 = scmp.eq.s32.totalorder %s12, 0
      %p46 = por %p44, %p45
      %p47 = scmp.ne.s32.totalorder %s36, %s39
      %p48 = scmp.eq.s32.totalorder %s17, 1
      %p49 = por %p47, %p48
      %p50 = scmp.ne.s32.totalorder %s39, %s40
      %p51 = scmp.eq.s32.totalorder %s17, 0
      %p52 = por %p50, %p51
      %p53 = scmp.ne.s32.totalorder %s39, %s40
      %p54 = scmp.eq.s32.totalorder %s18, 1
      %p55 = por %p53, %p54
      %p57 = scmp.ne.s32.totalorder %s40, %s56
      %p58 = scmp.eq.s32.totalorder %s18, 0
      %p59 = por %p57, %p58
      %s61 = sadd.s32 %s60, 1
      %p64 = scmp.eq.s32.totalorder %s12, 1
      %p65 = scmp.ne.s32.totalorder %s60, %s62
      %p66 = scmp.eq.s32.totalorder %s12, 0
      %p67 = por %p65, %p66
      %p68 = scmp.ne.s32.totalorder %s60, %s62
      %p69 = scmp.eq.s32.totalorder %s17, 1
      %p70 = por %p68, %p69
      %p71 = scmp.ne.s32.totalorder %s62, %s63
      %p72 = scmp.eq.s32.totalorder %s17, 0
      %p73 = por %p71, %p72
      %p74 = scmp.ne.s32.totalorder %s62, %s63
      %p75 = scmp.eq.s32.totalorder %s18, 1
      %p76 = por %p74, %p75
      %p78 = scmp.ne.s32.totalorder %s63, %s77
      %p79 = scmp.eq.s32.totalorder %s18, 0
      %p80 = por %p78, %p79
      %s82 = sadd.s32 %s81, 1
      %p85 = scmp.eq.s32.totalorder %s12, 1
      %p86 = scmp.ne.s32.totalorder %s81, %s83
      %p87 = scmp.eq.s32.totalorder %s12, 0
      %p88 = por %p86, %p87
      %p89 = scmp.ne.s32.totalorder %s81, %s83
      %p90 = scmp.eq.s32.totalorder %s17, 1
      %p91 = por %p89, %p90
      %p92 = scmp.ne.s32.totalorder %s83, %s84
      %p93 = scmp.eq.s32.totalorder %s17, 0
      %p94 = por %p92, %p93
      %p95 = scmp.ne.s32.totalorder %s83, %s84
      %p96 = scmp.eq.s32.totalorder %s18, 1
      %p97 = por %p95, %p96
      %p99 = scmp.ne.s32.totalorder %s84, %s98
      %p100 = scmp.eq.s32.totalorder %s18, 0
      %p101 = por %p99, %p100
      %s102 = ssub.s32 %s19, %s31
      %s103 = ssub.s32 %s20, %s27
      %s104 = sor.u32 %s102, %s103
      %p105 = scmp.eq.s32.totalorder %s104, 0
      %s107 = sadd.s32 %s106, 1
      %s108 = scalar_select %p105, %s106, %s107
      %p111 = pneg %p105
      %p112 = scmp.eq.s32.totalorder %s12, 1
      %p113 = por %p111, %p112
      %p114 = scmp.ne.s32.totalorder %s106, %s109
      %p115 = scmp.eq.s32.totalorder %s12, 0
      %p116 = por %p114, %p115
      %p117 = scmp.ne.s32.totalorder %s106, %s109
      %p118 = scmp.eq.s32.totalorder %s17, 1
      %p119 = por %p117, %p118
      %p120 = scmp.ne.s32.totalorder %s109, %s110
      %p121 = scmp.eq.s32.totalorder %s17, 0
      %p122 = por %p120, %p121
      %p123 = scmp.ne.s32.totalorder %s109, %s110
      %p124 = scmp.eq.s32.totalorder %s18, 1
      %p125 = por %p123, %p124
      %p127 = scmp.ne.s32.totalorder %s110, %s126
      %p128 = scmp.eq.s32.totalorder %s18, 0
      %p129 = por %p127, %p128
      %p130 = scmp.le.s32.totalorder 1, %s12
      %p131 = scmp.lt.s32.totalorder %s12, 3
      %p132 = pnand %p130, %p131
      %p133 = pneg %p132
      // Predicated region
      $region9: #{tpu_custom_call.1} parent=5 // pred_check
        _
      $region10: #{tpu_custom_call.1} parent=5 // pred_check_branch
        %135 = sbr.rel (%p132) target = $region12
      $region11: #{tpu_custom_call.1} parent=5 // pred_region
        %s136 = ssub.s32 %s12, 1
        // Predicated region
        $region13: #{tpu_custom_call.1} parent=11 // pred_check
          %p137 = pneg %p73
        $region14: #{tpu_custom_call.1} parent=11 // pred_check_branch
          %139 = sbr.rel (%p137) target = $region16
        $region15: #{tpu_custom_call.1} parent=11 // pred_region
          _
        $region16: #{tpu_custom_call.1} parent=11 // pred_fallthru
          _
        // Predicated region
        $region17: #{tpu_custom_call.1} parent=11 // pred_check
          %p140 = pneg %p94
        $region18: #{tpu_custom_call.1} parent=11 // pred_check_branch
          %142 = sbr.rel (%p140) target = $region20
        $region19: #{tpu_custom_call.1} parent=11 // pred_region
          _
        $region20: #{tpu_custom_call.1} parent=11 // pred_fallthru
          _
      $region12: #{tpu_custom_call.1} parent=5 // pred_fallthru
        _
      %p143 = scmp.lt.s32.totalorder %s12, 2
      // Predicated region
      $region21: #{tpu_custom_call.1} parent=5 // pred_check
        %p144 = pneg %p143
      $region22: #{tpu_custom_call.1} parent=5 // pred_check_branch
        %146 = sbr.rel (%p144) target = $region24
      $region23: #{tpu_custom_call.1} parent=5 // pred_region
        // Predicated region
        $region25: #{tpu_custom_call.1} parent=23 // pred_check
          %p147 = pneg %p46
        $region26: #{tpu_custom_call.1} parent=23 // pred_check_branch
          %149 = sbr.rel (%p147) target = $region28
        $region27: #{tpu_custom_call.1} parent=23 // pred_region
          %p150 = scmp.lt.s32.totalorder %s19, 0
          %s151 = scalar_select %p150, %s19, 0
          %p152 = scmp.lt.s32.totalorder %s20, 1
          %s153 = scalar_select %p152, %s20, 1
          %s154 = smul.addr %s151, 2
          %s155 = sadd.s32 %s153, %s154
          %s156 = smul.addr %s155, 8
          %s157 = scalar_lea.vmem %s0, %s156
        $region28: #{tpu_custom_call.1} parent=23 // pred_fallthru
          _
      $region24: #{tpu_custom_call.1} parent=5 // pred_fallthru
        _
      %p158 = scmp.le.s32.totalorder 1, %s12
      %p159 = scmp.lt.s32.totalorder %s12, 3
      %p160 = pnand %p158, %p159
      %p161 = pneg %p160
      // Predicated region
      $region29: #{tpu_custom_call.1} parent=5 // pred_check
        _
      $region30: #{tpu_custom_call.1} parent=5 // pred_check_branch
        %163 = sbr.rel (%p160) target = $region32
      $region31: #{tpu_custom_call.1} parent=5 // pred_region
        %s164 = ssub.s32 %s12, 1
        %p165 = scmp.lt.s32.totalorder %s21, 0
        %s166 = scalar_select %p165, %s21, 0
        %p167 = scmp.lt.s32.totalorder %s22, 1
        %s168 = scalar_select %p167, %s22, 1
        %s169 = smul.addr %s166, 2
        %s170 = sadd.s32 %s168, %s169
        %s171 = smul.addr %s170, 8
        %s172 = scalar_lea.vmem %s0, %s171
        %p173 = pneg %p52
        %p174 = pneg %p49
        %p175 = pneg %p73
        %p176 = pneg %p70
        %p177 = pneg %p94
        %p178 = pneg %p91
        %p179 = pneg %p122
        %p180 = pneg %p119
        %s181 = sand.u32 %s109, 1
        %s182 = scalar_lea.sflag [#allocation3], %s181
        %s183 = sand.u32 %s109, 1
        %s184 = smul.addr %s183, 16
        %s185 = scalar_lea.vmem [#allocation2], %s184
        %p186 = scmp.lt.s32.totalorder %s21, 0
        %s187 = scalar_select %p186, %s21, 0
        %p188 = scmp.lt.s32.totalorder %s22, 1
        %s189 = scalar_select %p188, %s22, 1
        %s190 = smul.addr %s187, 2
        %s191 = sadd.s32 %s189, %s190
        %s192 = smul.addr %s191, 8
        %s193 = scalar_lea.vmem %s0, %s192
        %v194 = vld [vmem:[%s193] sm:$0xff]
        %v195 = vld [vmem:[%s1] sm:$0xff]
        %v196 = vld [vmem:[%s1 + $0x8] sm:$0xff]
        %v197 = vld [vmem:[%s1 + $0x10] sm:$0xff]
        %v198 = vld [vmem:[%s1 + $0x18] sm:$0xff]
        %v199 = vld [vmem:[%s1 + $0x20] sm:$0xff]
        %v200 = vld [vmem:[%s1 + $0x28] sm:$0xff]
        %v201 = vld [vmem:[%s1 + $0x30] sm:$0xff]
        %v202 = vld [vmem:[%s1 + $0x38] sm:$0xff]
        %v203 = vld [vmem:[%s2] sm:$0xff]
        %v204 = vld [vmem:[%s2 + $0x8] sm:$0xff]
        %v205 = vld [vmem:[%s2 + $0x10] sm:$0xff]
        %v206 = vld [vmem:[%s2 + $0x18] sm:$0xff]
        %208 = vset.pattern.permute.xlu0 0
        %209 = vperm.xlu0 %208, %v203
        %v210 = vpop.permute.xlu0 %209
        %vm212 = vcmask 64512
        %v214 = vsel %vm212, %v195, 0
        %216 = vmatpush.msra.mxu0 0.0
        %217 = vmatpush.msra.mxu0 0.0
        %218 = vmatpush.msra.mxu0 0.0
        %219 = vmatpush.msra.mxu0 0.0
        %220 = vmatpush.msra.mxu0 0.0
        %221 = vmatpush.msra.mxu0 0.0
        %222 = vmatpush.msra.mxu0 0.0
        %223 = vmatpush.msra.mxu0 0.0
        %224 = vmatpush.msra.mxu0 0.0
        %225 = vmatpush.msra.mxu0 0.0
        %226 = vmatpush.msra.mxu0 0.0
        %227 = vmatpush.msra.mxu0 0.0
        %228 = vmatpush.msra.mxu0 0.0
        %229 = vmatpush.msra.mxu0 0.0
        %230 = vmatpush.msra.mxu0 0.0
        %231 = vmatpush.msra.mxu0 %v194
        %232 = vmatmul.f32.gmra.mxu0 %v214
        %v233 = vpop.f32.mrf.mxu0
        %v234 = vadd.f32 %v210, %v233
        %235 = vdwg.mxu0
        %v236 = vmax.f32 %v234, 0.0
        %238 = vset.pattern.permute.xlu0 0
        %239 = vperm.xlu0 %238, %v204
        %v240 = vpop.permute.xlu0 %239
        %v243 = vsel %vm212, %v196, 0
        %245 = vmatpush.msra.mxu0 0.0
        %246 = vmatpush.msra.mxu0 0.0
        %247 = vmatpush.msra.mxu0 0.0
        %248 = vmatpush.msra.mxu0 0.0
        %249 = vmatpush.msra.mxu0 0.0
        %250 = vmatpush.msra.mxu0 0.0
        %251 = vmatpush.msra.mxu0 0.0
        %252 = vmatpush.msra.mxu0 0.0
        %253 = vmatpush.msra.mxu0 0.0
        %254 = vmatpush.msra.mxu0 0.0
        %255 = vmatpush.msra.mxu0 0.0
        %256 = vmatpush.msra.mxu0 0.0
        %257 = vmatpush.msra.mxu0 0.0
        %258 = vmatpush.msra.mxu0 0.0
        %259 = vmatpush.msra.mxu0 0.0
        %260 = vmatpush.msra.mxu0 %v236
        %261 = vmatmul.f32.gmra.mxu0 %v243
        %v262 = vpop.f32.mrf.mxu0
        %v263 = vadd.f32 %v240, %v262
        %264 = vdwg.mxu0
        %v265 = vmax.f32 %v263, 0.0
        %v267 = vsel %vm212, %v199, 0
        %v270 = vsel %vm212, %v200, 0
        %272 = vmatpush.msra.mxu0 0.0
        %273 = vmatpush.msra.mxu0 0.0
        %274 = vmatpush.msra.mxu0 0.0
        %275 = vmatpush.msra.mxu0 0.0
        %276 = vmatpush.msra.mxu0 0.0
        %277 = vmatpush.msra.mxu0 0.0
        %278 = vmatpush.msra.mxu0 0.0
        %279 = vmatpush.msra.mxu0 0.0
        %280 = vmatpush.msra.mxu0 0.0
        %281 = vmatpush.msra.mxu0 0.0
        %282 = vmatpush.msra.mxu0 0.0
        %283 = vmatpush.msra.mxu0 0.0
        %284 = vmatpush.msra.mxu0 0.0
        %285 = vmatpush.msra.mxu0 0.0
        %286 = vmatpush.msra.mxu0 0.0
        %287 = vmatpush.msra.mxu0 %v236
        %288 = vmatmul.f32.gmra.mxu0 %v267
        %v289 = vpop.f32.mrf.mxu0
        %v290 = vadd.f32 0.0, %v289
        %291 = vmatmul.f32.gmra.mxu0 %v270
        %v292 = vpop.f32.mrf.mxu0
        %v293 = vadd.f32 0.0, %v292
        %294 = vdwg.mxu0
        %v296 = vsel %vm212, %v197, 0
        %v299 = vsel %vm212, %v198, 0
        %301 = vmatpush.msra.mxu0 0.0
        %302 = vmatpush.msra.mxu0 0.0
        %303 = vmatpush.msra.mxu0 0.0
        %304 = vmatpush.msra.mxu0 0.0
        %305 = vmatpush.msra.mxu0 0.0
        %306 = vmatpush.msra.mxu0 0.0
        %307 = vmatpush.msra.mxu0 0.0
        %308 = vmatpush.msra.mxu0 0.0
        %309 = vmatpush.msra.mxu0 0.0
        %310 = vmatpush.msra.mxu0 0.0
        %311 = vmatpush.msra.mxu0 0.0
        %312 = vmatpush.msra.mxu0 0.0
        %313 = vmatpush.msra.mxu0 0.0
        %314 = vmatpush.msra.mxu0 0.0
        %315 = vmatpush.msra.mxu0 0.0
        %316 = vmatpush.msra.mxu0 %v194
        %317 = vmatmul.f32.gmra.mxu0 %v296
        %v318 = vpop.f32.mrf.mxu0
        %v319 = vadd.f32 %v290, %v318
        %320 = vmatmul.f32.gmra.mxu0 %v299
        %v321 = vpop.f32.mrf.mxu0
        %v322 = vadd.f32 %v293, %v321
        %323 = vdwg.mxu0
        %v325 = vsel %vm212, %v201, 0
        %v328 = vsel %vm212, %v202, 0
        %330 = vmatpush.msra.mxu0 0.0
        %331 = vmatpush.msra.mxu0 0.0
        %332 = vmatpush.msra.mxu0 0.0
        %333 = vmatpush.msra.mxu0 0.0
        %334 = vmatpush.msra.mxu0 0.0
        %335 = vmatpush.msra.mxu0 0.0
        %336 = vmatpush.msra.mxu0 0.0
        %337 = vmatpush.msra.mxu0 0.0
        %338 = vmatpush.msra.mxu0 0.0
        %339 = vmatpush.msra.mxu0 0.0
        %340 = vmatpush.msra.mxu0 0.0
        %341 = vmatpush.msra.mxu0 0.0
        %342 = vmatpush.msra.mxu0 0.0
        %343 = vmatpush.msra.mxu0 0.0
        %344 = vmatpush.msra.mxu0 0.0
        %345 = vmatpush.msra.mxu0 %v265
        %346 = vmatmul.f32.gmra.mxu0 %v325
        %v347 = vpop.f32.mrf.mxu0
        %v348 = vadd.f32 0.0, %v347
        %349 = vmatmul.f32.gmra.mxu0 %v328
        %v350 = vpop.f32.mrf.mxu0
        %v351 = vadd.f32 0.0, %v350
        %352 = vdwg.mxu0
        %v353 = vadd.f32 %v319, %v348
        %v354 = vadd.f32 %v322, %v351
        %356 = vset.pattern.permute.xlu0 0
        %357 = vperm.xlu0 %356, %v205
        %v358 = vpop.permute.xlu0 %357
        %361 = vset.pattern.permute.xlu0 0
        %362 = vperm.xlu0 %361, %v206
        %v363 = vpop.permute.xlu0 %362
        %v365 = vadd.f32 %v353, %v358
        %v366 = vadd.f32 %v354, %v363
        %367 = vst [vmem:[%s185] sm:$0xff] %v365
        %368 = vst [vmem:[%s185 + $0x8] sm:$0xff] %v366
        %s369 = sand.u32 %s109, 1
        %s370 = scalar_lea.sflag [#allocation3], %s369
        %s371 = sand.u32 %s109, 1
        %s372 = smul.addr %s371, 16
        %s373 = scalar_lea.vmem [#allocation2], %s372
        // Predicated region
        $region33: #{tpu_custom_call.1} parent=31 // pred_check
          %p374 = pneg %p119
        $region34: #{tpu_custom_call.1} parent=31 // pred_check_branch
          %376 = sbr.rel (%p374) target = $region36
        $region35: #{tpu_custom_call.1} parent=31 // pred_region
          %378 = vsyncadd %s370, 0
          %s379 = smul.addr %s21, 4
          %s380 = sadd.s32 %s22, %s379
          %s381 = smul.addr %s380, 8
          %s382 = scalar_lea.hbm %s3, %s381
          %s383 = sshll.u32 %s373, 4
          %s384 = int_to_ptr.vmem [resolvable:$true] %s383
          %s385 = sshll.u32 %s382, 4
          %s386 = int_to_ptr.hbm [resolvable:$true] %s385
          %391 = dma.vmem_to_hbm [thread:$0]  %s384, 256, %s386, %s370, 128, 256, 8
        $region36: #{tpu_custom_call.1} parent=31 // pred_fallthru
          _
      $region32: #{tpu_custom_call.1} parent=5 // pred_fallthru
        _
      %p392 = scmp.le.s32.totalorder 2, %s12
      // Predicated region
      $region37: #{tpu_custom_call.1} parent=5 // pred_check
        %p393 = pneg %p392
      $region38: #{tpu_custom_call.1} parent=5 // pred_check_branch
        %395 = sbr.rel (%p393) target = $region40
      $region39: #{tpu_custom_call.1} parent=5 // pred_region
        %s396 = ssub.s32 %s12, 2
        // Predicated region
        $region41: #{tpu_custom_call.1} parent=39 // pred_check
          %p397 = pneg %p125
        $region42: #{tpu_custom_call.1} parent=39 // pred_check_branch
          %399 = sbr.rel (%p397) target = $region44
        $region43: #{tpu_custom_call.1} parent=39 // pred_region
          %s400 = sand.u32 %s110, 1
          %s401 = scalar_lea.sflag [#allocation3], %s400
          %s402 = sand.u32 %s110, 1
          %s403 = smul.addr %s402, 16
          %s404 = scalar_lea.vmem [#allocation2], %s403
          %406 = dma.done %s401, 256
        $region44: #{tpu_custom_call.1} parent=39 // pred_fallthru
          _
      $region40: #{tpu_custom_call.1} parent=5 // pred_fallthru
        _
    $region6: #{tpu_custom_call.1} parent=1 // loop_footer
      %s16 = sadd.s32 1, %s12
    $region7: #{tpu_custom_call.1} parent=1 // loop_footer_branch
      %11 = sbr.rel target = $region3
    $region8: #{tpu_custom_call.1} parent=1 // loop_exit
      _
    %407 = vsyncpa [#allocation3], 1
    %s408 = scalar_lea.sflag [#allocation3], 1
    %409 = vsyncpa %s408, 1

</llo_original>
